<compile_context>
chip_gen: v7x
topology: tpu7x:2x2x1
jax: 0.10.0
libtpu: 0.0.40
codegen_flags: <defaults>
</compile_context>

<pallas_src>
import jax
import jax.numpy as jnp
from jax.experimental import pallas as pl
from jax.experimental.pallas import tpu as pltpu

HIDDEN = 32
_LANES = 128


def _deep_resnet_kernel(
    xT_ref,
    w_in_ref, b_in_ref,
    w1a_ref, b1a_ref, w1b_ref, b1b_ref,
    w2a_ref, b2a_ref, w2b_ref, b2b_ref,
    w_out_ref, b_out_ref,
    o_ref,
):
    """Forward pass for one lane-dense (F, TB) batch tile (batch on lanes)."""
    xT = xT_ref[...]                                     # (F, TB)

    # input_layer + ReLU : (32, F) @ (F, TB) -> (32, TB)
    h = jnp.dot(w_in_ref[...], xT, preferred_element_type=jnp.float32) + b_in_ref[...]
    h = jnp.maximum(h, 0.0)

    # residual_block1: relu(L2(relu(L1(h)))) + h   (dropout == identity in eval)
    t = jnp.dot(w1a_ref[...], h, preferred_element_type=jnp.float32) + b1a_ref[...]
    t = jnp.maximum(t, 0.0)
    t = jnp.dot(w1b_ref[...], t, preferred_element_type=jnp.float32) + b1b_ref[...]
    t = jnp.maximum(t, 0.0)
    h = t + h

    # residual_block2
    t = jnp.dot(w2a_ref[...], h, preferred_element_type=jnp.float32) + b2a_ref[...]
    t = jnp.maximum(t, 0.0)
    t = jnp.dot(w2b_ref[...], t, preferred_element_type=jnp.float32) + b2b_ref[...]
    t = jnp.maximum(t, 0.0)
    h = t + h

    # output_layer (32 -> 1): VPU multiply + cross-sublane reduce (idle XLU),
    # producing the lane-dense (1, TB) output row directly — no N=1 MXU matmul,
    # no masked 1-lane stores.
    o_ref[...] = (
        jnp.sum(h * w_out_ref[...], axis=0, keepdims=True) + b_out_ref[...]
    )


def _round_up(n, m):
    return ((n + m - 1) // m) * m


def _choose_tb(b_pad, tb_cap):
    """Largest TB (multiple of 128) dividing b_pad, <= cap, with >= min(4, n) tiles."""
    n = b_pad // _LANES
    tb_cap = max(int(tb_cap), _LANES)
    min_tiles = min(4, n)  # >= 4 grid steps when possible -> v7x megacore sharding
    best_k = 1
    for k in range(1, n + 1):
        if n % k:
            continue
        if _LANES * k > tb_cap:
            continue
        if n // k < min_tiles:
            continue
        best_k = max(best_k, k)
    return _LANES * best_k


def deep_residual_network(x, params, *, tb=2048):
    """x: (B, F) float32. params: PyTorch-layout weights (out,in), (out,1) biases."""
    B, F = x.shape

    B_pad = _round_up(B, _LANES)          # pad batch only to a lane multiple
    TB = _choose_tb(B_pad, tb)
    grid = (B_pad // TB,)

    # Lane-dense transport: batch along the 128-lane axis, features on sublanes.
    # (Wrapper-side transpose is layout plumbing; the (F, B_pad) f32 HBM array
    # is fully dense — no lane padding.)
    xT = jnp.pad(x, ((0, B_pad - B), (0, 0))).T          # (F, B_pad)

    x_spec = pl.BlockSpec((F, TB), lambda i: (0, i))
    out_spec = pl.BlockSpec((1, TB), lambda i: (0, i))   # lane-dense output slab

    def const_spec(a):
        # Constant index_map -> parameter DMA'd once, VMEM-resident across steps.
        return pl.BlockSpec(a.shape, lambda i: (0, 0))

    weight_args = (
        params["w_in"], params["b_in"],
        params["w1a"], params["b1a"], params["w1b"], params["b1b"],
        params["w2a"], params["b2a"], params["w2b"], params["b2b"],
        params["w_out"], params["b_out"],
    )
    in_specs = [x_spec] + [const_spec(a) for a in weight_args]

    # Advisory cost estimate (dense x transport + lane-dense output).
    flops = 2 * B_pad * (F * HIDDEN + 4 * HIDDEN * HIDDEN + HIDDEN)
    weight_bytes = sum(int(a.size) * 4 for a in weight_args)
    bytes_accessed = 4 * B_pad * (F + 1) + weight_bytes
    cost = pl.CostEstimate(flops=flops, transcendentals=0, bytes_accessed=bytes_accessed)

    out_row = pl.pallas_call(
        _deep_resnet_kernel,
        out_shape=jax.ShapeDtypeStruct((1, B_pad), jnp.float32),
        grid=grid,
        in_specs=in_specs,
        out_specs=out_spec,
        compiler_params=pltpu.CompilerParams(
            dimension_semantics=("parallel",),        # v7x: shard batch tiles over 2 TCs
            vmem_limit_bytes=32 * 1024 * 1024,        # explicit (v5e default is 16 MiB)
        ),
        cost_estimate=cost,
    )(xT, *weight_args)

    return out_row[0, :B].reshape(B, 1)


def init_params(key, input_features, hidden=HIDDEN):
    """Deterministic synthetic init. Weights in PyTorch (out,in) layout; (out,1) biases."""
    keys = jax.random.split(key, 12)

    def lin(kw, kb, fan_in, fan_out):
        # uniform(-1/sqrt(fan_in), 1/sqrt(fan_in)), like torch's default Linear init
        bound = 1.0 / jnp.sqrt(float(fan_in))
        w = jax.random.uniform(kw, (fan_out, fan_in), jnp.float32, -bound, bound)
        b = jax.random.uniform(kb, (fan_out, 1), jnp.float32, -bound, bound)
        return w, b

    w_in, b_in = lin(keys[0], keys[1], input_features, hidden)
    w1a, b1a = lin(keys[2], keys[3], hidden, hidden)
    w1b, b1b = lin(keys[4], keys[5], hidden, hidden)
    w2a, b2a = lin(keys[6], keys[7], hidden, hidden)
    w2b, b2b = lin(keys[8], keys[9], hidden, hidden)
    w_out_row, b_out = lin(keys[10], keys[11], hidden, 1)   # (1, hidden), (1, 1)
    w_out = w_out_row.T                                     # (hidden, 1) column for the reduce

    return dict(
        w_in=w_in, b_in=b_in,
        w1a=w1a, b1a=b1a, w1b=w1b, b1b=b1b,
        w2a=w2a, b2a=b2a, w2b=w2b, b2b=b2b,
        w_out=w_out, b_out=b_out,
    )


def reference_forward(x, p):
    """Pure-JAX reference mirroring the PyTorch module (eval mode)."""
    h = jnp.maximum(x @ p["w_in"].T + p["b_in"].T, 0.0)
    t = jnp.maximum(h @ p["w1a"].T + p["b1a"].T, 0.0)
    t = jnp.maximum(t @ p["w1b"].T + p["b1b"].T, 0.0)
    h = t + h
    t = jnp.maximum(h @ p["w2a"].T + p["b2a"].T, 0.0)
    t = jnp.maximum(t @ p["w2b"].T + p["b2b"].T, 0.0)
    h = t + h
    return h @ p["w_out"] + p["b_out"]


if __name__ == "__main__":
    key = jax.random.PRNGKey(0)
    k_x, k_p, k_x2 = jax.random.split(key, 3)

    batch, input_features = 8, 16
    x = jax.random.normal(k_x, (batch, input_features), jnp.float32)
    params = init_params(k_p, input_features)

    # Small-shape run (single 128-lane tile).
    out = deep_residual_network(x, params)
    out = jax.block_until_ready(out)
    ref = reference_forward(x, params)
    assert out.shape == (batch, 1)
    assert jnp.allclose(out, ref, atol=1e-5, rtol=1e-5), "mismatch vs reference (small)"

    # Larger, non-multiple batch: pads 3000 -> 3072 and runs a 4-step parallel grid.
    big_batch = 3000
    x_big = jax.random.normal(k_x2, (big_batch, input_features), jnp.float32)
    out_big = jax.block_until_ready(deep_residual_network(x_big, params, tb=2048))
    ref_big = reference_forward(x_big, params)
    assert out_big.shape == (big_batch, 1)
    assert jnp.allclose(out_big, ref_big, atol=1e-4, rtol=1e-4), "mismatch vs reference (big)"

    print("KERNEL_OK")
</pallas_src>

<mosaic_0001>
module attributes {stable_mosaic.version = 11 : i64} {
  func.func @_deep_resnet_kernel(%arg0: i32, %arg1: memref<16x128xf32, #tpu.memory_space<vmem>>, %arg2: memref<32x16xf32, #tpu.memory_space<vmem>>, %arg3: memref<32x1xf32, #tpu.memory_space<vmem>>, %arg4: memref<32x32xf32, #tpu.memory_space<vmem>>, %arg5: memref<32x1xf32, #tpu.memory_space<vmem>>, %arg6: memref<32x32xf32, #tpu.memory_space<vmem>>, %arg7: memref<32x1xf32, #tpu.memory_space<vmem>>, %arg8: memref<32x32xf32, #tpu.memory_space<vmem>>, %arg9: memref<32x1xf32, #tpu.memory_space<vmem>>, %arg10: memref<32x32xf32, #tpu.memory_space<vmem>>, %arg11: memref<32x1xf32, #tpu.memory_space<vmem>>, %arg12: memref<32x1xf32, #tpu.memory_space<vmem>>, %arg13: memref<1x1xf32, #tpu.memory_space<vmem>>, %arg14: memref<1x128xf32, #tpu.memory_space<vmem>>) attributes {dimension_semantics = [#tpu.dimension_semantics<parallel>], iteration_bounds = array<i64: 1>, scalar_prefetch = 0 : i64, scratch_operands = 0 : i64, tpu.core_type = #tpu.core_type<tc>, window_params = [{transform_indices = @transform_0, window_bounds = array<i64: 16, 128>}, {pipeline_mode = #tpu.pipeline_mode<synchronous>, transform_indices = @transform_1, window_bounds = array<i64: 32, 16>}, {pipeline_mode = #tpu.pipeline_mode<synchronous>, transform_indices = @transform_2, window_bounds = array<i64: 32, 1>}, {pipeline_mode = #tpu.pipeline_mode<synchronous>, transform_indices = @transform_3, window_bounds = array<i64: 32, 32>}, {pipeline_mode = #tpu.pipeline_mode<synchronous>, transform_indices = @transform_4, window_bounds = array<i64: 32, 1>}, {pipeline_mode = #tpu.pipeline_mode<synchronous>, transform_indices = @transform_5, window_bounds = array<i64: 32, 32>}, {pipeline_mode = #tpu.pipeline_mode<synchronous>, transform_indices = @transform_6, window_bounds = array<i64: 32, 1>}, {pipeline_mode = #tpu.pipeline_mode<synchronous>, transform_indices = @transform_7, window_bounds = array<i64: 32, 32>}, {pipeline_mode = #tpu.pipeline_mode<synchronous>, transform_indices = @transform_8, window_bounds = array<i64: 32, 1>}, {pipeline_mode = #tpu.pipeline_mode<synchronous>, transform_indices = @transform_9, window_bounds = array<i64: 32, 32>}, {pipeline_mode = #tpu.pipeline_mode<synchronous>, transform_indices = @transform_10, window_bounds = array<i64: 32, 1>}, {pipeline_mode = #tpu.pipeline_mode<synchronous>, transform_indices = @transform_11, window_bounds = array<i64: 32, 1>}, {pipeline_mode = #tpu.pipeline_mode<synchronous>, transform_indices = @transform_12, window_bounds = array<i64: 1, 1>}, {transform_indices = @transform_13, window_bounds = array<i64: 1, 128>}]} {
    %c0 = arith.constant 0 : index
    %c0_0 = arith.constant 0 : index
    %0 = vector.load %arg1[%c0, %c0_0] : memref<16x128xf32, #tpu.memory_space<vmem>>, vector<16x128xf32>
    %c0_1 = arith.constant 0 : index
    %c0_2 = arith.constant 0 : index
    %1 = vector.load %arg2[%c0_1, %c0_2] : memref<32x16xf32, #tpu.memory_space<vmem>>, vector<32x16xf32>
    %cst = arith.constant dense<0.000000e+00> : vector<32x128xf32>
    %2 = tpu.matmul %1, %0, %cst {dimension_numbers = #tpu.dot_dimension_numbers<[1], [0], [0], [1], [0, 0, 1, 1], [], []>} : vector<32x16xf32>, vector<16x128xf32>, vector<32x128xf32> -> vector<32x128xf32>
    %c0_3 = arith.constant 0 : index
    %c0_4 = arith.constant 0 : index
    %3 = vector.load %arg3[%c0_3, %c0_4] : memref<32x1xf32, #tpu.memory_space<vmem>>, vector<32x1xf32>
    %4 = vector.broadcast %3 : vector<32x1xf32> to vector<32x128xf32>
    %5 = arith.addf %2, %4 : vector<32x128xf32>
    %cst_5 = arith.constant 0.000000e+00 : f32
    %6 = vector.broadcast %cst_5 : f32 to vector<32x128xf32>
    %7 = arith.maximumf %5, %6 : vector<32x128xf32>
    %c0_6 = arith.constant 0 : index
    %c0_7 = arith.constant 0 : index
    %8 = vector.load %arg4[%c0_6, %c0_7] : memref<32x32xf32, #tpu.memory_space<vmem>>, vector<32x32xf32>
    %cst_8 = arith.constant dense<0.000000e+00> : vector<32x128xf32>
    %9 = tpu.matmul %8, %7, %cst_8 {dimension_numbers = #tpu.dot_dimension_numbers<[1], [0], [0], [1], [0, 0, 1, 1], [], []>} : vector<32x32xf32>, vector<32x128xf32>, vector<32x128xf32> -> vector<32x128xf32>
    %c0_9 = arith.constant 0 : index
    %c0_10 = arith.constant 0 : index
    %10 = vector.load %arg5[%c0_9, %c0_10] : memref<32x1xf32, #tpu.memory_space<vmem>>, vector<32x1xf32>
    %11 = vector.broadcast %10 : vector<32x1xf32> to vector<32x128xf32>
    %12 = arith.addf %9, %11 : vector<32x128xf32>
    %cst_11 = arith.constant 0.000000e+00 : f32
    %13 = vector.broadcast %cst_11 : f32 to vector<32x128xf32>
    %14 = arith.maximumf %12, %13 : vector<32x128xf32>
    %c0_12 = arith.constant 0 : index
    %c0_13 = arith.constant 0 : index
    %15 = vector.load %arg6[%c0_12, %c0_13] : memref<32x32xf32, #tpu.memory_space<vmem>>, vector<32x32xf32>
    %cst_14 = arith.constant dense<0.000000e+00> : vector<32x128xf32>
    %16 = tpu.matmul %15, %14, %cst_14 {dimension_numbers = #tpu.dot_dimension_numbers<[1], [0], [0], [1], [0, 0, 1, 1], [], []>} : vector<32x32xf32>, vector<32x128xf32>, vector<32x128xf32> -> vector<32x128xf32>
    %c0_15 = arith.constant 0 : index
    %c0_16 = arith.constant 0 : index
    %17 = vector.load %arg7[%c0_15, %c0_16] : memref<32x1xf32, #tpu.memory_space<vmem>>, vector<32x1xf32>
    %18 = vector.broadcast %17 : vector<32x1xf32> to vector<32x128xf32>
    %19 = arith.addf %16, %18 : vector<32x128xf32>
    %cst_17 = arith.constant 0.000000e+00 : f32
    %20 = vector.broadcast %cst_17 : f32 to vector<32x128xf32>
    %21 = arith.maximumf %19, %20 : vector<32x128xf32>
    %22 = arith.addf %21, %7 : vector<32x128xf32>
    %c0_18 = arith.constant 0 : index
    %c0_19 = arith.constant 0 : index
    %23 = vector.load %arg8[%c0_18, %c0_19] : memref<32x32xf32, #tpu.memory_space<vmem>>, vector<32x32xf32>
    %cst_20 = arith.constant dense<0.000000e+00> : vector<32x128xf32>
    %24 = tpu.matmul %23, %22, %cst_20 {dimension_numbers = #tpu.dot_dimension_numbers<[1], [0], [0], [1], [0, 0, 1, 1], [], []>} : vector<32x32xf32>, vector<32x128xf32>, vector<32x128xf32> -> vector<32x128xf32>
    %c0_21 = arith.constant 0 : index
    %c0_22 = arith.constant 0 : index
    %25 = vector.load %arg9[%c0_21, %c0_22] : memref<32x1xf32, #tpu.memory_space<vmem>>, vector<32x1xf32>
    %26 = vector.broadcast %25 : vector<32x1xf32> to vector<32x128xf32>
    %27 = arith.addf %24, %26 : vector<32x128xf32>
    %cst_23 = arith.constant 0.000000e+00 : f32
    %28 = vector.broadcast %cst_23 : f32 to vector<32x128xf32>
    %29 = arith.maximumf %27, %28 : vector<32x128xf32>
    %c0_24 = arith.constant 0 : index
    %c0_25 = arith.constant 0 : index
    %30 = vector.load %arg10[%c0_24, %c0_25] : memref<32x32xf32, #tpu.memory_space<vmem>>, vector<32x32xf32>
    %cst_26 = arith.constant dense<0.000000e+00> : vector<32x128xf32>
    %31 = tpu.matmul %30, %29, %cst_26 {dimension_numbers = #tpu.dot_dimension_numbers<[1], [0], [0], [1], [0, 0, 1, 1], [], []>} : vector<32x32xf32>, vector<32x128xf32>, vector<32x128xf32> -> vector<32x128xf32>
    %c0_27 = arith.constant 0 : index
    %c0_28 = arith.constant 0 : index
    %32 = vector.load %arg11[%c0_27, %c0_28] : memref<32x1xf32, #tpu.memory_space<vmem>>, vector<32x1xf32>
    %33 = vector.broadcast %32 : vector<32x1xf32> to vector<32x128xf32>
    %34 = arith.addf %31, %33 : vector<32x128xf32>
    %cst_29 = arith.constant 0.000000e+00 : f32
    %35 = vector.broadcast %cst_29 : f32 to vector<32x128xf32>
    %36 = arith.maximumf %34, %35 : vector<32x128xf32>
    %37 = arith.addf %36, %22 : vector<32x128xf32>
    %c0_30 = arith.constant 0 : index
    %c0_31 = arith.constant 0 : index
    %38 = vector.load %arg12[%c0_30, %c0_31] : memref<32x1xf32, #tpu.memory_space<vmem>>, vector<32x1xf32>
    %39 = vector.broadcast %38 : vector<32x1xf32> to vector<32x128xf32>
    %40 = arith.mulf %37, %39 : vector<32x128xf32>
    %cst_32 = arith.constant dense<0.000000e+00> : vector<128xf32>
    %41 = vector.multi_reduction <add>, %40, %cst_32 [0] : vector<32x128xf32> to vector<128xf32>
    %42 = vector.shape_cast %41 : vector<128xf32> to vector<1x128xf32>
    %c0_33 = arith.constant 0 : index
    %c0_34 = arith.constant 0 : index
    %43 = vector.load %arg13[%c0_33, %c0_34] : memref<1x1xf32, #tpu.memory_space<vmem>>, vector<1x1xf32>
    %44 = vector.broadcast %43 : vector<1x1xf32> to vector<1x128xf32>
    %45 = arith.addf %42, %44 : vector<1x128xf32>
    %c0_35 = arith.constant 0 : index
    %c0_36 = arith.constant 0 : index
    %46 = vector.load %arg14[%c0_35, %c0_36] : memref<1x128xf32, #tpu.memory_space<vmem>>, vector<1x128xf32>
    tpu.vector_store %arg14[%c0_35, %c0_36], %45 {strides = array<i32>} : memref<1x128xf32, #tpu.memory_space<vmem>>, vector<1x128xf32>,
    return
  }
  func.func @transform_0(%arg0: i32) -> (i32, i32) {
    %c0_i32 = arith.constant 0 : i32
    %c0_i32_0 = arith.constant 0 : i32
    return %c0_i32, %arg0 : i32, i32
  }
  func.func @transform_1(%arg0: i32) -> (i32, i32) {
    %c0_i32 = arith.constant 0 : i32
    %c0_i32_0 = arith.constant 0 : i32
    %c0_i32_1 = arith.constant 0 : i32
    return %c0_i32, %c0_i32_0 : i32, i32
  }
  func.func @transform_2(%arg0: i32) -> (i32, i32) {
    %c0_i32 = arith.constant 0 : i32
    %c0_i32_0 = arith.constant 0 : i32
    %c0_i32_1 = arith.constant 0 : i32
    return %c0_i32, %c0_i32_0 : i32, i32
  }
  func.func @transform_3(%arg0: i32) -> (i32, i32) {
    %c0_i32 = arith.constant 0 : i32
    %c0_i32_0 = arith.constant 0 : i32
    %c0_i32_1 = arith.constant 0 : i32
    return %c0_i32, %c0_i32_0 : i32, i32
  }
  func.func @transform_4(%arg0: i32) -> (i32, i32) {
    %c0_i32 = arith.constant 0 : i32
    %c0_i32_0 = arith.constant 0 : i32
    %c0_i32_1 = arith.constant 0 : i32
    return %c0_i32, %c0_i32_0 : i32, i32
  }
  func.func @transform_5(%arg0: i32) -> (i32, i32) {
    %c0_i32 = arith.constant 0 : i32
    %c0_i32_0 = arith.constant 0 : i32
    %c0_i32_1 = arith.constant 0 : i32
    return %c0_i32, %c0_i32_0 : i32, i32
  }
  func.func @transform_6(%arg0: i32) -> (i32, i32) {
    %c0_i32 = arith.constant 0 : i32
    %c0_i32_0 = arith.constant 0 : i32
    %c0_i32_1 = arith.constant 0 : i32
    return %c0_i32, %c0_i32_0 : i32, i32
  }
  func.func @transform_7(%arg0: i32) -> (i32, i32) {
    %c0_i32 = arith.constant 0 : i32
    %c0_i32_0 = arith.constant 0 : i32
    %c0_i32_1 = arith.constant 0 : i32
    return %c0_i32, %c0_i32_0 : i32, i32
  }
  func.func @transform_8(%arg0: i32) -> (i32, i32) {
    %c0_i32 = arith.constant 0 : i32
    %c0_i32_0 = arith.constant 0 : i32
    %c0_i32_1 = arith.constant 0 : i32
    return %c0_i32, %c0_i32_0 : i32, i32
  }
  func.func @transform_9(%arg0: i32) -> (i32, i32) {
    %c0_i32 = arith.constant 0 : i32
    %c0_i32_0 = arith.constant 0 : i32
    %c0_i32_1 = arith.constant 0 : i32
    return %c0_i32, %c0_i32_0 : i32, i32
  }
  func.func @transform_10(%arg0: i32) -> (i32, i32) {
    %c0_i32 = arith.constant 0 : i32
    %c0_i32_0 = arith.constant 0 : i32
    %c0_i32_1 = arith.constant 0 : i32
    return %c0_i32, %c0_i32_0 : i32, i32
  }
  func.func @transform_11(%arg0: i32) -> (i32, i32) {
    %c0_i32 = arith.constant 0 : i32
    %c0_i32_0 = arith.constant 0 : i32
    %c0_i32_1 = arith.constant 0 : i32
    return %c0_i32, %c0_i32_0 : i32, i32
  }
  func.func @transform_12(%arg0: i32) -> (i32, i32) {
    %c0_i32 = arith.constant 0 : i32
    %c0_i32_0 = arith.constant 0 : i32
    %c0_i32_1 = arith.constant 0 : i32
    return %c0_i32, %c0_i32_0 : i32, i32
  }
  func.func @transform_13(%arg0: i32) -> (i32, i32) {
    %c0_i32 = arith.constant 0 : i32
    %c0_i32_0 = arith.constant 0 : i32
    return %c0_i32, %arg0 : i32, i32
  }
}

</mosaic_0001>

<llo_original>
// kernel: tpu_custom_call.1
$region0: #{tpu_custom_call.1}
  #allocation0 [shape = 'u32[]', space=smem, size = 0x4, offset = 0x4, fixed_abs, tag = 'smem constant byte address 0x4 - core index']
  #allocation1 [shape = 'u32[144,128]{1,0:T(1,128)}', space=vmem, size = 0x12000, scoped, tag = 'internal scratch']
  #allocation2 [shape = 'f32[1,1]{1,0:T(1,128)S(1)}', space=vmem, size = 0x200, scoped, tag = 'scoped memory for tpu_custom_call.1']
  %s0 = inlined_call_operand.vmem [shape: f32[16,128], index: 0, kind: input, shape index: {}]
  %s1 = inlined_call_operand.vmem [shape: f32[32,16], index: 1, kind: input, shape index: {}]
  %s2 = inlined_call_operand.vmem [shape: f32[32,1], index: 2, kind: input, shape index: {}]
  %s3 = inlined_call_operand.vmem [shape: f32[32,32], index: 3, kind: input, shape index: {}]
  %s4 = inlined_call_operand.vmem [shape: f32[32,1], index: 4, kind: input, shape index: {}]
  %s5 = inlined_call_operand.vmem [shape: f32[32,32], index: 5, kind: input, shape index: {}]
  %s6 = inlined_call_operand.vmem [shape: f32[32,1], index: 6, kind: input, shape index: {}]
  %s7 = inlined_call_operand.vmem [shape: f32[32,32], index: 7, kind: input, shape index: {}]
  %s8 = inlined_call_operand.vmem [shape: f32[32,1], index: 8, kind: input, shape index: {}]
  %s9 = inlined_call_operand.vmem [shape: f32[32,32], index: 9, kind: input, shape index: {}]
  %s10 = inlined_call_operand.vmem [shape: f32[32,1], index: 10, kind: input, shape index: {}]
  %s11 = inlined_call_operand.vmem [shape: f32[32,1], index: 11, kind: input, shape index: {}]
  %s12 = inlined_call_operand.<no memory space> [shape: f32[1,1], index: 12, kind: input, shape index: {}]
  %s13 = inlined_call_operand.hbm [shape: f32[1,128], index: 13, kind: output, shape index: {}]
  %s14 = sld [smem:[#allocation0]]
  $region62: #{tpu_custom_call.1} parent=0
    _
  %s16 = ssub.s32 1, %s14
  %s17 = scalar_select 0, %s16, %s14
  %v18 = vstv %s12
  %19 = vst [vmem:[#allocation2] sm:$0x1] %v18
  $region1: #{tpu_custom_call.1} parent=0
    #allocation3 [shape = 'u8[512]{0}', space=vmem, size = 0x400, scoped, tag = 'output window, operand 0, single buffered']
    #allocation4 [shape = 's32[1]{0}', space=sflag, size = 0x4, scoped, tag = 'scoped memory for tpu_custom_call.1']
    %20 = vsyncpa [#allocation4], 0
    // Predicated region
    $region2: #{tpu_custom_call.1} parent=1 // pred_check
      _
    $region3: #{tpu_custom_call.1} parent=1 // pred_check_branch
      %22 = sbr.rel (0) target = $region5
    $region4: #{tpu_custom_call.1} parent=1 // pred_region
      _
    $region5: #{tpu_custom_call.1} parent=1 // pred_fallthru
      _
    // Predicated region
    $region6: #{tpu_custom_call.1} parent=1 // pred_check
      _
    $region7: #{tpu_custom_call.1} parent=1 // pred_check_branch
      %24 = sbr.rel (0) target = $region9
    $region8: #{tpu_custom_call.1} parent=1 // pred_region
      _
    $region9: #{tpu_custom_call.1} parent=1 // pred_fallthru
      _
    // Predicated region
    $region10: #{tpu_custom_call.1} parent=1 // pred_check
      _
    $region11: #{tpu_custom_call.1} parent=1 // pred_check_branch
      %26 = sbr.rel (0) target = $region13
    $region12: #{tpu_custom_call.1} parent=1 // pred_region
      _
    $region13: #{tpu_custom_call.1} parent=1 // pred_fallthru
      _
    // Predicated region
    $region14: #{tpu_custom_call.1} parent=1 // pred_check
      _
    $region15: #{tpu_custom_call.1} parent=1 // pred_check_branch
      %28 = sbr.rel (0) target = $region17
    $region16: #{tpu_custom_call.1} parent=1 // pred_region
      _
    $region17: #{tpu_custom_call.1} parent=1 // pred_fallthru
      _
    // Predicated region
    $region18: #{tpu_custom_call.1} parent=1 // pred_check
      _
    $region19: #{tpu_custom_call.1} parent=1 // pred_check_branch
      %30 = sbr.rel (0) target = $region21
    $region20: #{tpu_custom_call.1} parent=1 // pred_region
      _
    $region21: #{tpu_custom_call.1} parent=1 // pred_fallthru
      _
    // Predicated region
    $region22: #{tpu_custom_call.1} parent=1 // pred_check
      _
    $region23: #{tpu_custom_call.1} parent=1 // pred_check_branch
      %32 = sbr.rel (0) target = $region25
    $region24: #{tpu_custom_call.1} parent=1 // pred_region
      _
    $region25: #{tpu_custom_call.1} parent=1 // pred_fallthru
      _
    // Predicated region
    $region26: #{tpu_custom_call.1} parent=1 // pred_check
      _
    $region27: #{tpu_custom_call.1} parent=1 // pred_check_branch
      %34 = sbr.rel (0) target = $region29
    $region28: #{tpu_custom_call.1} parent=1 // pred_region
      _
    $region29: #{tpu_custom_call.1} parent=1 // pred_fallthru
      _
    // Predicated region
    $region30: #{tpu_custom_call.1} parent=1 // pred_check
      _
    $region31: #{tpu_custom_call.1} parent=1 // pred_check_branch
      %36 = sbr.rel (0) target = $region33
    $region32: #{tpu_custom_call.1} parent=1 // pred_region
      _
    $region33: #{tpu_custom_call.1} parent=1 // pred_fallthru
      _
    // Predicated region
    $region34: #{tpu_custom_call.1} parent=1 // pred_check
      _
    $region35: #{tpu_custom_call.1} parent=1 // pred_check_branch
      %38 = sbr.rel (0) target = $region37
    $region36: #{tpu_custom_call.1} parent=1 // pred_region
      _
    $region37: #{tpu_custom_call.1} parent=1 // pred_fallthru
      _
    // Predicated region
    $region38: #{tpu_custom_call.1} parent=1 // pred_check
      _
    $region39: #{tpu_custom_call.1} parent=1 // pred_check_branch
      %40 = sbr.rel (0) target = $region41
    $region40: #{tpu_custom_call.1} parent=1 // pred_region
      _
    $region41: #{tpu_custom_call.1} parent=1 // pred_fallthru
      _
    // Predicated region
    $region42: #{tpu_custom_call.1} parent=1 // pred_check
      _
    $region43: #{tpu_custom_call.1} parent=1 // pred_check_branch
      %42 = sbr.rel (0) target = $region45
    $region44: #{tpu_custom_call.1} parent=1 // pred_region
      _
    $region45: #{tpu_custom_call.1} parent=1 // pred_fallthru
      _
    // Predicated region
    $region46: #{tpu_custom_call.1} parent=1 // pred_check
      _
    $region47: #{tpu_custom_call.1} parent=1 // pred_check_branch
      %44 = sbr.rel (0) target = $region49
    $region48: #{tpu_custom_call.1} parent=1 // pred_region
      _
    $region49: #{tpu_custom_call.1} parent=1 // pred_fallthru
      _
    // Predicated region
    $region50: #{tpu_custom_call.1} parent=1 // pred_check
      _
    $region51: #{tpu_custom_call.1} parent=1 // pred_check_branch
      %46 = sbr.rel (0) target = $region53
    $region52: #{tpu_custom_call.1} parent=1 // pred_region
      _
    $region53: #{tpu_custom_call.1} parent=1 // pred_fallthru
      _
    %v47 = vld [vmem:[%s0] sm:$0xff]
    %v48 = vld [vmem:[%s0 + $0x8] sm:$0xff]
    %v49 = vld [vmem:[%s1] sm:$0xff]
    %v50 = vld [vmem:[%s1 + $0x8] sm:$0xff]
    %v51 = vld [vmem:[%s1 + $0x10] sm:$0xff]
    %v52 = vld [vmem:[%s1 + $0x18] sm:$0xff]
    %v53 = vld [vmem:[%s2] sm:$0xff]
    %v54 = vld [vmem:[%s2 + $0x8] sm:$0xff]
    %v55 = vld [vmem:[%s2 + $0x10] sm:$0xff]
    %v56 = vld [vmem:[%s2 + $0x18] sm:$0xff]
    %58 = vset.pattern.permute.xlu0 0
    %59 = vperm.xlu0 %58, %v53
    %v60 = vpop.permute.xlu0 %59
    %63 = vset.pattern.permute.xlu0 0
    %64 = vperm.xlu0 %63, %v54
    %v65 = vpop.permute.xlu0 %64
    %68 = vset.pattern.permute.xlu0 0
    %69 = vperm.xlu0 %68, %v55
    %v70 = vpop.permute.xlu0 %69
    %73 = vset.pattern.permute.xlu0 0
    %74 = vperm.xlu0 %73, %v56
    %v75 = vpop.permute.xlu0 %74
    %vm77 = vcmask 130048
    %v79 = vsel %vm77, %v49, 0
    %v82 = vsel %vm77, %v50, 0
    %v85 = vsel %vm77, %v51, 0
    %v88 = vsel %vm77, %v52, 0
    %90 = vmatprep.subr.mxu0 0.0
    %91 = vmatpush1.msra.mxu0 %v47
    %92 = vmatprep.subr.mxu0 0.0
    %93 = vmatpush1.msra.mxu0 %v48
    %94 = vmatprep.subr.mxu0 0.0
    %95 = vmatpush1.msra.mxu0 0.0
    %96 = vmatprep.subr.mxu0 0.0
    %97 = vmatpush1.msra.mxu0 0.0
    %98 = vmatprep.subr.mxu0 0.0
    %99 = vmatpush1.msra.mxu0 0.0
    %100 = vmatprep.subr.mxu0 0.0
    %101 = vmatpush1.msra.mxu0 0.0
    %102 = vmatprep.subr.mxu0 0.0
    %103 = vmatpush1.msra.mxu0 0.0
    %104 = vmatprep.subr.mxu0 0.0
    %105 = vmatpush1.msra.mxu0 0.0
    %106 = vmatprep.subr.mxu0 0.0
    %107 = vmatpush1.msra.mxu0 0.0
    %108 = vmatprep.subr.mxu0 0.0
    %109 = vmatpush1.msra.mxu0 0.0
    %110 = vmatprep.subr.mxu0 0.0
    %111 = vmatpush1.msra.mxu0 0.0
    %112 = vmatprep.subr.mxu0 0.0
    %113 = vmatpush1.msra.mxu0 0.0
    %114 = vmatprep.subr.mxu0 0.0
    %115 = vmatpush1.msra.mxu0 0.0
    %116 = vmatprep.subr.mxu0 0.0
    %117 = vmatpush1.msra.mxu0 0.0
    %118 = vmatprep.subr.mxu0 0.0
    %119 = vmatpush1.msra.mxu0 0.0
    %120 = vmatprep.subr.mxu0 0.0
    %121 = vmatpush1.msra.mxu0 0.0
    %122 = vmatprep.subr.mxu0 0.0
    %123 = vmatpush1.msra.mxu0 0.0
    %124 = vmatprep.subr.mxu0 0.0
    %125 = vmatpush1.msra.mxu0 0.0
    %126 = vmatprep.subr.mxu0 0.0
    %127 = vmatpush1.msra.mxu0 0.0
    %128 = vmatprep.subr.mxu0 0.0
    %129 = vmatpush1.msra.mxu0 0.0
    %130 = vmatprep.subr.mxu0 0.0
    %131 = vmatpush1.msra.mxu0 0.0
    %132 = vmatprep.subr.mxu0 0.0
    %133 = vmatpush1.msra.mxu0 0.0
    %134 = vmatprep.subr.mxu0 0.0
    %135 = vmatpush1.msra.mxu0 0.0
    %136 = vmatprep.subr.mxu0 0.0
    %137 = vmatpush1.msra.mxu0 0.0
    %138 = vmatprep.subr.mxu0 0.0
    %139 = vmatpush1.msra.mxu0 0.0
    %140 = vmatprep.subr.mxu0 0.0
    %141 = vmatpush1.msra.mxu0 0.0
    %142 = vmatprep.subr.mxu0 0.0
    %143 = vmatpush1.msra.mxu0 0.0
    %144 = vmatprep.subr.mxu0 0.0
    %145 = vmatpush1.msra.mxu0 0.0
    %146 = vmatprep.subr.mxu0 0.0
    %147 = vmatpush1.msra.mxu0 0.0
    %148 = vmatprep.subr.mxu0 0.0
    %149 = vmatpush1.msra.mxu0 0.0
    %150 = vmatprep.subr.mxu0 0.0
    %151 = vmatpush1.msra.mxu0 0.0
    %152 = vmatprep.subr.mxu0 0.0
    %153 = vmatpush1.msra.mxu0 0.0
    %154 = vmatprep.mubr.f32.mxu0 0.0
    %155 = vmatmul.mubr.f32.gmra.mrb[0].mxu0 %v79
    %v156 = vpop.f32.mrb[0].mxu0
    %v157 = vadd.f32 %v60, %v156
    %v158 = vpop.f32.mrb[0].mxu0
    %159 = vmatprep.mubr.f32.mxu0 0.0
    %160 = vmatmul.mubr.f32.gmra.mrb[0].mxu0 %v82
    %v161 = vpop.f32.mrb[0].mxu0
    %v162 = vadd.f32 %v65, %v161
    %v163 = vpop.f32.mrb[0].mxu0
    %164 = vmatprep.mubr.f32.mxu0 0.0
    %165 = vmatmul.mubr.f32.gmra.mrb[0].mxu0 %v85
    %v166 = vpop.f32.mrb[0].mxu0
    %v167 = vadd.f32 %v70, %v166
    %v168 = vpop.f32.mrb[0].mxu0
    %169 = vmatprep.mubr.f32.mxu0 0.0
    %170 = vmatmul.mubr.f32.gmra.mrb[0].mxu0 %v88
    %v171 = vpop.f32.mrb[0].mxu0
    %v172 = vadd.f32 %v75, %v171
    %v173 = vpop.f32.mrb[0].mxu0
    %174 = vdwg.mxu0
    %v175 = vmax.f32 %v157, 0.0
    %v176 = vmax.f32 %v162, 0.0
    %v177 = vmax.f32 %v167, 0.0
    %v178 = vmax.f32 %v172, 0.0
    %v179 = vld [vmem:[%s3] sm:$0xff]
    %v180 = vld [vmem:[%s3 + $0x8] sm:$0xff]
    %v181 = vld [vmem:[%s3 + $0x10] sm:$0xff]
    %v182 = vld [vmem:[%s3 + $0x18] sm:$0xff]
    %v183 = vld [vmem:[%s4] sm:$0xff]
    %v184 = vld [vmem:[%s4 + $0x8] sm:$0xff]
    %v185 = vld [vmem:[%s4 + $0x10] sm:$0xff]
    %v186 = vld [vmem:[%s4 + $0x18] sm:$0xff]
    %188 = vset.pattern.permute.xlu0 0
    %189 = vperm.xlu0 %188, %v183
    %v190 = vpop.permute.xlu0 %189
    %193 = vset.pattern.permute.xlu0 0
    %194 = vperm.xlu0 %193, %v184
    %v195 = vpop.permute.xlu0 %194
    %198 = vset.pattern.permute.xlu0 0
    %199 = vperm.xlu0 %198, %v185
    %v200 = vpop.permute.xlu0 %199
    %203 = vset.pattern.permute.xlu0 0
    %204 = vperm.xlu0 %203, %v186
    %v205 = vpop.permute.xlu0 %204
    %vm207 = vcmask 261120
    %v209 = vsel %vm207, %v179, 0
    %v212 = vsel %vm207, %v180, 0
    %v215 = vsel %vm207, %v181, 0
    %v218 = vsel %vm207, %v182, 0
    %220 = vmatprep.subr.mxu0 0.0
    %221 = vmatpush1.msra.mxu0 %v175
    %222 = vmatprep.subr.mxu0 0.0
    %223 = vmatpush1.msra.mxu0 %v176
    %224 = vmatprep.subr.mxu0 0.0
    %225 = vmatpush1.msra.mxu0 %v177
    %226 = vmatprep.subr.mxu0 0.0
    %227 = vmatpush1.msra.mxu0 %v178
    %228 = vmatprep.subr.mxu0 0.0
    %229 = vmatpush1.msra.mxu0 0.0
    %230 = vmatprep.subr.mxu0 0.0
    %231 = vmatpush1.msra.mxu0 0.0
    %232 = vmatprep.subr.mxu0 0.0
    %233 = vmatpush1.msra.mxu0 0.0
    %234 = vmatprep.subr.mxu0 0.0
    %235 = vmatpush1.msra.mxu0 0.0
    %236 = vmatprep.subr.mxu0 0.0
    %237 = vmatpush1.msra.mxu0 0.0
    %238 = vmatprep.subr.mxu0 0.0
    %239 = vmatpush1.msra.mxu0 0.0
    %240 = vmatprep.subr.mxu0 0.0
    %241 = vmatpush1.msra.mxu0 0.0
    %242 = vmatprep.subr.mxu0 0.0
    %243 = vmatpush1.msra.mxu0 0.0
    %244 = vmatprep.subr.mxu0 0.0
    %245 = vmatpush1.msra.mxu0 0.0
    %246 = vmatprep.subr.mxu0 0.0
    %247 = vmatpush1.msra.mxu0 0.0
    %248 = vmatprep.subr.mxu0 0.0
    %249 = vmatpush1.msra.mxu0 0.0
    %250 = vmatprep.subr.mxu0 0.0
    %251 = vmatpush1.msra.mxu0 0.0
    %252 = vmatprep.subr.mxu0 0.0
    %253 = vmatpush1.msra.mxu0 0.0
    %254 = vmatprep.subr.mxu0 0.0
    %255 = vmatpush1.msra.mxu0 0.0
    %256 = vmatprep.subr.mxu0 0.0
    %257 = vmatpush1.msra.mxu0 0.0
    %258 = vmatprep.subr.mxu0 0.0
    %259 = vmatpush1.msra.mxu0 0.0
    %260 = vmatprep.subr.mxu0 0.0
    %261 = vmatpush1.msra.mxu0 0.0
    %262 = vmatprep.subr.mxu0 0.0
    %263 = vmatpush1.msra.mxu0 0.0
    %264 = vmatprep.subr.mxu0 0.0
    %265 = vmatpush1.msra.mxu0 0.0
    %266 = vmatprep.subr.mxu0 0.0
    %267 = vmatpush1.msra.mxu0 0.0
    %268 = vmatprep.subr.mxu0 0.0
    %269 = vmatpush1.msra.mxu0 0.0
    %270 = vmatprep.subr.mxu0 0.0
    %271 = vmatpush1.msra.mxu0 0.0
    %272 = vmatprep.subr.mxu0 0.0
    %273 = vmatpush1.msra.mxu0 0.0
    %274 = vmatprep.subr.mxu0 0.0
    %275 = vmatpush1.msra.mxu0 0.0
    %276 = vmatprep.subr.mxu0 0.0
    %277 = vmatpush1.msra.mxu0 0.0
    %278 = vmatprep.subr.mxu0 0.0
    %279 = vmatpush1.msra.mxu0 0.0
    %280 = vmatprep.subr.mxu0 0.0
    %281 = vmatpush1.msra.mxu0 0.0
    %282 = vmatprep.subr.mxu0 0.0
    %283 = vmatpush1.msra.mxu0 0.0
    %284 = vmatprep.mubr.f32.mxu0 0.0
    %285 = vmatmul.mubr.f32.gmra.mrb[0].mxu0 %v209
    %v286 = vpop.f32.mrb[0].mxu0
    %v287 = vadd.f32 %v190, %v286
    %v288 = vpop.f32.mrb[0].mxu0
    %289 = vmatprep.mubr.f32.mxu0 0.0
    %290 = vmatmul.mubr.f32.gmra.mrb[0].mxu0 %v212
    %v291 = vpop.f32.mrb[0].mxu0
    %v292 = vadd.f32 %v195, %v291
    %v293 = vpop.f32.mrb[0].mxu0
    %294 = vmatprep.mubr.f32.mxu0 0.0
    %295 = vmatmul.mubr.f32.gmra.mrb[0].mxu0 %v215
    %v296 = vpop.f32.mrb[0].mxu0
    %v297 = vadd.f32 %v200, %v296
    %v298 = vpop.f32.mrb[0].mxu0
    %299 = vmatprep.mubr.f32.mxu0 0.0
    %300 = vmatmul.mubr.f32.gmra.mrb[0].mxu0 %v218
    %v301 = vpop.f32.mrb[0].mxu0
    %v302 = vadd.f32 %v205, %v301
    %v303 = vpop.f32.mrb[0].mxu0
    %304 = vdwg.mxu0
    %v305 = vmax.f32 %v287, 0.0
    %v306 = vmax.f32 %v292, 0.0
    %v307 = vmax.f32 %v297, 0.0
    %v308 = vmax.f32 %v302, 0.0
    %v309 = vld [vmem:[%s5] sm:$0xff]
    %v310 = vld [vmem:[%s5 + $0x8] sm:$0xff]
    %v311 = vld [vmem:[%s5 + $0x10] sm:$0xff]
    %v312 = vld [vmem:[%s5 + $0x18] sm:$0xff]
    %v313 = vld [vmem:[%s6] sm:$0xff]
    %v314 = vld [vmem:[%s6 + $0x8] sm:$0xff]
    %v315 = vld [vmem:[%s6 + $0x10] sm:$0xff]
    %v316 = vld [vmem:[%s6 + $0x18] sm:$0xff]
    %318 = vset.pattern.permute.xlu0 0
    %319 = vperm.xlu0 %318, %v313
    %v320 = vpop.permute.xlu0 %319
    %323 = vset.pattern.permute.xlu0 0
    %324 = vperm.xlu0 %323, %v314
    %v325 = vpop.permute.xlu0 %324
    %328 = vset.pattern.permute.xlu0 0
    %329 = vperm.xlu0 %328, %v315
    %v330 = vpop.permute.xlu0 %329
    %333 = vset.pattern.permute.xlu0 0
    %334 = vperm.xlu0 %333, %v316
    %v335 = vpop.permute.xlu0 %334
    %v338 = vsel %vm207, %v309, 0
    %v341 = vsel %vm207, %v310, 0
    %v344 = vsel %vm207, %v311, 0
    %v347 = vsel %vm207, %v312, 0
    %349 = vmatprep.subr.mxu0 0.0
    %350 = vmatpush1.msra.mxu0 %v305
    %351 = vmatprep.subr.mxu0 0.0
    %352 = vmatpush1.msra.mxu0 %v306
    %353 = vmatprep.subr.mxu0 0.0
    %354 = vmatpush1.msra.mxu0 %v307
    %355 = vmatprep.subr.mxu0 0.0
    %356 = vmatpush1.msra.mxu0 %v308
    %357 = vmatprep.subr.mxu0 0.0
    %358 = vmatpush1.msra.mxu0 0.0
    %359 = vmatprep.subr.mxu0 0.0
    %360 = vmatpush1.msra.mxu0 0.0
    %361 = vmatprep.subr.mxu0 0.0
    %362 = vmatpush1.msra.mxu0 0.0
    %363 = vmatprep.subr.mxu0 0.0
    %364 = vmatpush1.msra.mxu0 0.0
    %365 = vmatprep.subr.mxu0 0.0
    %366 = vmatpush1.msra.mxu0 0.0
    %367 = vmatprep.subr.mxu0 0.0
    %368 = vmatpush1.msra.mxu0 0.0
    %369 = vmatprep.subr.mxu0 0.0
    %370 = vmatpush1.msra.mxu0 0.0
    %371 = vmatprep.subr.mxu0 0.0
    %372 = vmatpush1.msra.mxu0 0.0
    %373 = vmatprep.subr.mxu0 0.0
    %374 = vmatpush1.msra.mxu0 0.0
    %375 = vmatprep.subr.mxu0 0.0
    %376 = vmatpush1.msra.mxu0 0.0
    %377 = vmatprep.subr.mxu0 0.0
    %378 = vmatpush1.msra.mxu0 0.0
    %379 = vmatprep.subr.mxu0 0.0
    %380 = vmatpush1.msra.mxu0 0.0
    %381 = vmatprep.subr.mxu0 0.0
    %382 = vmatpush1.msra.mxu0 0.0
    %383 = vmatprep.subr.mxu0 0.0
    %384 = vmatpush1.msra.mxu0 0.0
    %385 = vmatprep.subr.mxu0 0.0
    %386 = vmatpush1.msra.mxu0 0.0
    %387 = vmatprep.subr.mxu0 0.0
    %388 = vmatpush1.msra.mxu0 0.0
    %389 = vmatprep.subr.mxu0 0.0
    %390 = vmatpush1.msra.mxu0 0.0
    %391 = vmatprep.subr.mxu0 0.0
    %392 = vmatpush1.msra.mxu0 0.0
    %393 = vmatprep.subr.mxu0 0.0
    %394 = vmatpush1.msra.mxu0 0.0
    %395 = vmatprep.subr.mxu0 0.0
    %396 = vmatpush1.msra.mxu0 0.0
    %397 = vmatprep.subr.mxu0 0.0
    %398 = vmatpush1.msra.mxu0 0.0
    %399 = vmatprep.subr.mxu0 0.0
    %400 = vmatpush1.msra.mxu0 0.0
    %401 = vmatprep.subr.mxu0 0.0
    %402 = vmatpush1.msra.mxu0 0.0
    %403 = vmatprep.subr.mxu0 0.0
    %404 = vmatpush1.msra.mxu0 0.0
    %405 = vmatprep.subr.mxu0 0.0
    %406 = vmatpush1.msra.mxu0 0.0
    %407 = vmatprep.subr.mxu0 0.0
    %408 = vmatpush1.msra.mxu0 0.0
    %409 = vmatprep.subr.mxu0 0.0
    %410 = vmatpush1.msra.mxu0 0.0
    %411 = vmatprep.subr.mxu0 0.0
    %412 = vmatpush1.msra.mxu0 0.0
    %413 = vmatprep.mubr.f32.mxu0 0.0
    %414 = vmatmul.mubr.f32.gmra.mrb[0].mxu0 %v338
    %v415 = vpop.f32.mrb[0].mxu0
    %v416 = vadd.f32 %v320, %v415
    %v417 = vpop.f32.mrb[0].mxu0
    %418 = vmatprep.mubr.f32.mxu0 0.0
    %419 = vmatmul.mubr.f32.gmra.mrb[0].mxu0 %v341
    %v420 = vpop.f32.mrb[0].mxu0
    %v421 = vadd.f32 %v325, %v420
    %v422 = vpop.f32.mrb[0].mxu0
    %423 = vmatprep.mubr.f32.mxu0 0.0
    %424 = vmatmul.mubr.f32.gmra.mrb[0].mxu0 %v344
    %v425 = vpop.f32.mrb[0].mxu0
    %v426 = vadd.f32 %v330, %v425
    %v427 = vpop.f32.mrb[0].mxu0
    %428 = vmatprep.mubr.f32.mxu0 0.0
    %429 = vmatmul.mubr.f32.gmra.mrb[0].mxu0 %v347
    %v430 = vpop.f32.mrb[0].mxu0
    %v431 = vadd.f32 %v335, %v430
    %v432 = vpop.f32.mrb[0].mxu0
    %433 = vdwg.mxu0
    %v434 = vmax.f32 %v416, 0.0
    %v435 = vmax.f32 %v421, 0.0
    %v436 = vmax.f32 %v426, 0.0
    %v437 = vmax.f32 %v431, 0.0
    %v438 = vadd.f32 %v434, %v175
    %v439 = vadd.f32 %v435, %v176
    %v440 = vadd.f32 %v436, %v177
    %v441 = vadd.f32 %v437, %v178
    %v442 = vld [vmem:[%s7] sm:$0xff]
    %v443 = vld [vmem:[%s7 + $0x8] sm:$0xff]
    %v444 = vld [vmem:[%s7 + $0x10] sm:$0xff]
    %v445 = vld [vmem:[%s7 + $0x18] sm:$0xff]
    %v446 = vld [vmem:[%s8] sm:$0xff]
    %v447 = vld [vmem:[%s8 + $0x8] sm:$0xff]
    %v448 = vld [vmem:[%s8 + $0x10] sm:$0xff]
    %v449 = vld [vmem:[%s8 + $0x18] sm:$0xff]
    %451 = vset.pattern.permute.xlu0 0
    %452 = vperm.xlu0 %451, %v446
    %v453 = vpop.permute.xlu0 %452
    %456 = vset.pattern.permute.xlu0 0
    %457 = vperm.xlu0 %456, %v447
    %v458 = vpop.permute.xlu0 %457
    %461 = vset.pattern.permute.xlu0 0
    %462 = vperm.xlu0 %461, %v448
    %v463 = vpop.permute.xlu0 %462
    %466 = vset.pattern.permute.xlu0 0
    %467 = vperm.xlu0 %466, %v449
    %v468 = vpop.permute.xlu0 %467
    %v471 = vsel %vm207, %v442, 0
    %v474 = vsel %vm207, %v443, 0
    %v477 = vsel %vm207, %v444, 0
    %v480 = vsel %vm207, %v445, 0
    %482 = vmatprep.subr.mxu0 0.0
    %483 = vmatpush1.msra.mxu0 %v438
    %484 = vmatprep.subr.mxu0 0.0
    %485 = vmatpush1.msra.mxu0 %v439
    %486 = vmatprep.subr.mxu0 0.0
    %487 = vmatpush1.msra.mxu0 %v440
    %488 = vmatprep.subr.mxu0 0.0
    %489 = vmatpush1.msra.mxu0 %v441
    %490 = vmatprep.subr.mxu0 0.0
    %491 = vmatpush1.msra.mxu0 0.0
    %492 = vmatprep.subr.mxu0 0.0
    %493 = vmatpush1.msra.mxu0 0.0
    %494 = vmatprep.subr.mxu0 0.0
    %495 = vmatpush1.msra.mxu0 0.0
    %496 = vmatprep.subr.mxu0 0.0
    %497 = vmatpush1.msra.mxu0 0.0
    %498 = vmatprep.subr.mxu0 0.0
    %499 = vmatpush1.msra.mxu0 0.0
    %500 = vmatprep.subr.mxu0 0.0
    %501 = vmatpush1.msra.mxu0 0.0
    %502 = vmatprep.subr.mxu0 0.0
    %503 = vmatpush1.msra.mxu0 0.0
    %504 = vmatprep.subr.mxu0 0.0
    %505 = vmatpush1.msra.mxu0 0.0
    %506 = vmatprep.subr.mxu0 0.0
    %507 = vmatpush1.msra.mxu0 0.0
    %508 = vmatprep.subr.mxu0 0.0
    %509 = vmatpush1.msra.mxu0 0.0
    %510 = vmatprep.subr.mxu0 0.0
    %511 = vmatpush1.msra.mxu0 0.0
    %512 = vmatprep.subr.mxu0 0.0
    %513 = vmatpush1.msra.mxu0 0.0
    %514 = vmatprep.subr.mxu0 0.0
    %515 = vmatpush1.msra.mxu0 0.0
    %516 = vmatprep.subr.mxu0 0.0
    %517 = vmatpush1.msra.mxu0 0.0
    %518 = vmatprep.subr.mxu0 0.0
    %519 = vmatpush1.msra.mxu0 0.0
    %520 = vmatprep.subr.mxu0 0.0
    %521 = vmatpush1.msra.mxu0 0.0
    %522 = vmatprep.subr.mxu0 0.0
    %523 = vmatpush1.msra.mxu0 0.0
    %524 = vmatprep.subr.mxu0 0.0
    %525 = vmatpush1.msra.mxu0 0.0
    %526 = vmatprep.subr.mxu0 0.0
    %527 = vmatpush1.msra.mxu0 0.0
    %528 = vmatprep.subr.mxu0 0.0
    %529 = vmatpush1.msra.mxu0 0.0
    %530 = vmatprep.subr.mxu0 0.0
    %531 = vmatpush1.msra.mxu0 0.0
    %532 = vmatprep.subr.mxu0 0.0
    %533 = vmatpush1.msra.mxu0 0.0
    %534 = vmatprep.subr.mxu0 0.0
    %535 = vmatpush1.msra.mxu0 0.0
    %536 = vmatprep.subr.mxu0 0.0
    %537 = vmatpush1.msra.mxu0 0.0
    %538 = vmatprep.subr.mxu0 0.0
    %539 = vmatpush1.msra.mxu0 0.0
    %540 = vmatprep.subr.mxu0 0.0
    %541 = vmatpush1.msra.mxu0 0.0
    %542 = vmatprep.subr.mxu0 0.0
    %543 = vmatpush1.msra.mxu0 0.0
    %544 = vmatprep.subr.mxu0 0.0
    %545 = vmatpush1.msra.mxu0 0.0
    %546 = vmatprep.mubr.f32.mxu0 0.0
    %547 = vmatmul.mubr.f32.gmra.mrb[0].mxu0 %v471
    %v548 = vpop.f32.mrb[0].mxu0
    %v549 = vadd.f32 %v453, %v548
    %v550 = vpop.f32.mrb[0].mxu0
    %551 = vmatprep.mubr.f32.mxu0 0.0
    %552 = vmatmul.mubr.f32.gmra.mrb[0].mxu0 %v474
    %v553 = vpop.f32.mrb[0].mxu0
    %v554 = vadd.f32 %v458, %v553
    %v555 = vpop.f32.mrb[0].mxu0
    %556 = vmatprep.mubr.f32.mxu0 0.0
    %557 = vmatmul.mubr.f32.gmra.mrb[0].mxu0 %v477
    %v558 = vpop.f32.mrb[0].mxu0
    %v559 = vadd.f32 %v463, %v558
    %v560 = vpop.f32.mrb[0].mxu0
    %561 = vmatprep.mubr.f32.mxu0 0.0
    %562 = vmatmul.mubr.f32.gmra.mrb[0].mxu0 %v480
    %v563 = vpop.f32.mrb[0].mxu0
    %v564 = vadd.f32 %v468, %v563
    %v565 = vpop.f32.mrb[0].mxu0
    %566 = vdwg.mxu0
    %v567 = vmax.f32 %v549, 0.0
    %v568 = vmax.f32 %v554, 0.0
    %v569 = vmax.f32 %v559, 0.0
    %v570 = vmax.f32 %v564, 0.0
    %v571 = vld [vmem:[%s9] sm:$0xff]
    %v572 = vld [vmem:[%s9 + $0x8] sm:$0xff]
    %v573 = vld [vmem:[%s9 + $0x10] sm:$0xff]
    %v574 = vld [vmem:[%s9 + $0x18] sm:$0xff]
    %v575 = vld [vmem:[%s10] sm:$0xff]
    %v576 = vld [vmem:[%s10 + $0x8] sm:$0xff]
    %v577 = vld [vmem:[%s10 + $0x10] sm:$0xff]
    %v578 = vld [vmem:[%s10 + $0x18] sm:$0xff]
    %580 = vset.pattern.permute.xlu0 0
    %581 = vperm.xlu0 %580, %v575
    %v582 = vpop.permute.xlu0 %581
    %585 = vset.pattern.permute.xlu0 0
    %586 = vperm.xlu0 %585, %v576
    %v587 = vpop.permute.xlu0 %586
    %590 = vset.pattern.permute.xlu0 0
    %591 = vperm.xlu0 %590, %v577
    %v592 = vpop.permute.xlu0 %591
    %595 = vset.pattern.permute.xlu0 0
    %596 = vperm.xlu0 %595, %v578
    %v597 = vpop.permute.xlu0 %596
    %v600 = vsel %vm207, %v571, 0
    %v603 = vsel %vm207, %v572, 0
    %v606 = vsel %vm207, %v573, 0
    %v609 = vsel %vm207, %v574, 0
    %611 = vmatprep.subr.mxu0 0.0
    %612 = vmatpush1.msra.mxu0 %v567
    %613 = vmatprep.subr.mxu0 0.0
    %614 = vmatpush1.msra.mxu0 %v568
    %615 = vmatprep.subr.mxu0 0.0
    %616 = vmatpush1.msra.mxu0 %v569
    %617 = vmatprep.subr.mxu0 0.0
    %618 = vmatpush1.msra.mxu0 %v570
    %619 = vmatprep.subr.mxu0 0.0
    %620 = vmatpush1.msra.mxu0 0.0
    %621 = vmatprep.subr.mxu0 0.0
    %622 = vmatpush1.msra.mxu0 0.0
    %623 = vmatprep.subr.mxu0 0.0
    %624 = vmatpush1.msra.mxu0 0.0
    %625 = vmatprep.subr.mxu0 0.0
    %626 = vmatpush1.msra.mxu0 0.0
    %627 = vmatprep.subr.mxu0 0.0
    %628 = vmatpush1.msra.mxu0 0.0
    %629 = vmatprep.subr.mxu0 0.0
    %630 = vmatpush1.msra.mxu0 0.0
    %631 = vmatprep.subr.mxu0 0.0
    %632 = vmatpush1.msra.mxu0 0.0
    %633 = vmatprep.subr.mxu0 0.0
    %634 = vmatpush1.msra.mxu0 0.0
    %635 = vmatprep.subr.mxu0 0.0
    %636 = vmatpush1.msra.mxu0 0.0
    %637 = vmatprep.subr.mxu0 0.0
    %638 = vmatpush1.msra.mxu0 0.0
    %639 = vmatprep.subr.mxu0 0.0
    %640 = vmatpush1.msra.mxu0 0.0
    %641 = vmatprep.subr.mxu0 0.0
    %642 = vmatpush1.msra.mxu0 0.0
    %643 = vmatprep.subr.mxu0 0.0
    %644 = vmatpush1.msra.mxu0 0.0
    %645 = vmatprep.subr.mxu0 0.0
    %646 = vmatpush1.msra.mxu0 0.0
    %647 = vmatprep.subr.mxu0 0.0
    %648 = vmatpush1.msra.mxu0 0.0
    %649 = vmatprep.subr.mxu0 0.0
    %650 = vmatpush1.msra.mxu0 0.0
    %651 = vmatprep.subr.mxu0 0.0
    %652 = vmatpush1.msra.mxu0 0.0
    %653 = vmatprep.subr.mxu0 0.0
    %654 = vmatpush1.msra.mxu0 0.0
    %655 = vmatprep.subr.mxu0 0.0
    %656 = vmatpush1.msra.mxu0 0.0
    %657 = vmatprep.subr.mxu0 0.0
    %658 = vmatpush1.msra.mxu0 0.0
    %659 = vmatprep.subr.mxu0 0.0
    %660 = vmatpush1.msra.mxu0 0.0
    %661 = vmatprep.subr.mxu0 0.0
    %662 = vmatpush1.msra.mxu0 0.0
    %663 = vmatprep.subr.mxu0 0.0
    %664 = vmatpush1.msra.mxu0 0.0
    %665 = vmatprep.subr.mxu0 0.0
    %666 = vmatpush1.msra.mxu0 0.0
    %667 = vmatprep.subr.mxu0 0.0
    %668 = vmatpush1.msra.mxu0 0.0
    %669 = vmatprep.subr.mxu0 0.0
    %670 = vmatpush1.msra.mxu0 0.0
    %671 = vmatprep.subr.mxu0 0.0
    %672 = vmatpush1.msra.mxu0 0.0
    %673 = vmatprep.subr.mxu0 0.0
    %674 = vmatpush1.msra.mxu0 0.0
    %675 = vmatprep.mubr.f32.mxu0 0.0
    %676 = vmatmul.mubr.f32.gmra.mrb[0].mxu0 %v600
    %v677 = vpop.f32.mrb[0].mxu0
    %v678 = vadd.f32 %v582, %v677
    %v679 = vpop.f32.mrb[0].mxu0
    %680 = vmatprep.mubr.f32.mxu0 0.0
    %681 = vmatmul.mubr.f32.gmra.mrb[0].mxu0 %v603
    %v682 = vpop.f32.mrb[0].mxu0
    %v683 = vadd.f32 %v587, %v682
    %v684 = vpop.f32.mrb[0].mxu0
    %685 = vmatprep.mubr.f32.mxu0 0.0
    %686 = vmatmul.mubr.f32.gmra.mrb[0].mxu0 %v606
    %v687 = vpop.f32.mrb[0].mxu0
    %v688 = vadd.f32 %v592, %v687
    %v689 = vpop.f32.mrb[0].mxu0
    %690 = vmatprep.mubr.f32.mxu0 0.0
    %691 = vmatmul.mubr.f32.gmra.mrb[0].mxu0 %v609
    %v692 = vpop.f32.mrb[0].mxu0
    %v693 = vadd.f32 %v597, %v692
    %v694 = vpop.f32.mrb[0].mxu0
    %695 = vdwg.mxu0
    %v696 = vmax.f32 %v678, 0.0
    %v697 = vmax.f32 %v683, 0.0
    %v698 = vmax.f32 %v688, 0.0
    %v699 = vmax.f32 %v693, 0.0
    %v700 = vadd.f32 %v696, %v438
    %v701 = vadd.f32 %v697, %v439
    %v702 = vadd.f32 %v698, %v440
    %v703 = vadd.f32 %v699, %v441
    %v704 = vld [vmem:[%s11] sm:$0xff]
    %v705 = vld [vmem:[%s11 + $0x8] sm:$0xff]
    %v706 = vld [vmem:[%s11 + $0x10] sm:$0xff]
    %v707 = vld [vmem:[%s11 + $0x18] sm:$0xff]
    %709 = vset.pattern.permute.xlu0 0
    %710 = vperm.xlu0 %709, %v704
    %v711 = vpop.permute.xlu0 %710
    %714 = vset.pattern.permute.xlu0 0
    %715 = vperm.xlu0 %714, %v705
    %v716 = vpop.permute.xlu0 %715
    %719 = vset.pattern.permute.xlu0 0
    %720 = vperm.xlu0 %719, %v706
    %v721 = vpop.permute.xlu0 %720
    %724 = vset.pattern.permute.xlu0 0
    %725 = vperm.xlu0 %724, %v707
    %v726 = vpop.permute.xlu0 %725
    %v728 = vmul.f32 %v700, %v711
    %v729 = vmul.f32 %v701, %v716
    %v730 = vmul.f32 %v702, %v721
    %v731 = vmul.f32 %v703, %v726
    %v732 = vadd.f32 %v728, %v729
    %v733 = vadd.f32 %v732, %v730
    %v734 = vadd.f32 %v733, %v731
    %v735 = vrot.slane %v734, 4
    %v736 = vadd.f32 %v734, %v735
    %v737 = vrot.slane %v736, 2
    %v738 = vadd.f32 %v736, %v737
    %v739 = vrot.slane %v738, 1
    %v740 = vadd.f32 %v738, %v739
    %v741 = vld [vmem:[#allocation2] sm:$0x1]
    %743 = vset.pattern.permute.xlu0 0
    %744 = vperm.xlu0 %743, %v741
    %v745 = vpop.permute.xlu0 %744
    %v747 = vlaneseq
    %v748 = vshrl.u32 %v747, 7
    %v749 = vsub.s32 0, %v748
    %v750 = vrot.slane %v745, %v749
    %v751 = vadd.f32 %v740, %v750
    %752 = vst [vmem:[#allocation3] sm:$0x1] %v751
    // Predicated region
    $region54: #{tpu_custom_call.1} parent=1 // pred_check
      _
    $region55: #{tpu_custom_call.1} parent=1 // pred_check_branch
      %754 = sbr.rel (0) target = $region57
    $region56: #{tpu_custom_call.1} parent=1 // pred_region
      %s756 = ssub.s32 16, 16
      %757 = vsyncadd [#allocation4], %s756
      %s759 = sshll.u32 [#allocation3], 4
      %s760 = int_to_ptr.vmem [resolvable:$true] %s759
      %762 = dma.vmem_to_hbm [thread:$0]  %s760, 16, %s13, [#allocation4]
    $region57: #{tpu_custom_call.1} parent=1 // pred_fallthru
      _
    // Predicated region
    $region58: #{tpu_custom_call.1} parent=1 // pred_check
      _
    $region59: #{tpu_custom_call.1} parent=1 // pred_check_branch
      %764 = sbr.rel (0) target = $region61
    $region60: #{tpu_custom_call.1} parent=1 // pred_region
      %765 = dma.done [#allocation4], 16
    $region61: #{tpu_custom_call.1} parent=1 // pred_fallthru
      _
    %766 = vsyncpa [#allocation4], 1

</llo_original>
